<compile_context>
chip_gen: v6e
topology: v6e:2x2x1
jax: 0.10.0
libtpu: 0.0.40
codegen_flags: <defaults>
</compile_context>

<pallas_src>
import functools
import math

import jax
import jax.numpy as jnp
from jax import lax
from jax.experimental import pallas as pl
from jax.experimental.pallas import tpu as pltpu


VMEM_LIMIT = 64 * 1024 * 1024  # fits v7x's 64 MiB physical VMEM; > scoped default


def _pick_tile(dim, preferred):
    """Largest sensible tile <= preferred that divides dim (full dim if tiny)."""
    if dim % preferred == 0:
        return preferred
    for t in range(min(preferred, dim), 0, -1):
        if dim % t == 0 and (t % 128 == 0 or t == dim):
            return t
    return dim


# ----------------------------- LayerNorm kernel ----------------------------

def _layernorm_kernel(x_ref, g_ref, b_ref, o_ref, *, eps):
    x = x_ref[...].astype(jnp.float32)
    mean = jnp.mean(x, axis=-1, keepdims=True)
    var = jnp.mean(jnp.square(x - mean), axis=-1, keepdims=True)
    y = (x - mean) * lax.rsqrt(var + eps)
    o_ref[...] = (y * g_ref[...].astype(jnp.float32)
                  + b_ref[...].astype(jnp.float32)).astype(o_ref.dtype)


def layernorm(x, gamma, beta, eps, *, row_tile=256):
    S, E = x.shape
    t = _pick_tile(S, row_tile)
    return pl.pallas_call(
        functools.partial(_layernorm_kernel, eps=eps),
        grid=(S // t,),
        in_specs=[pl.BlockSpec((t, E), lambda i: (i, 0)),
                  pl.BlockSpec((1, E), lambda i: (0, 0)),
                  pl.BlockSpec((1, E), lambda i: (0, 0))],
        out_specs=pl.BlockSpec((t, E), lambda i: (i, 0)),
        out_shape=jax.ShapeDtypeStruct(x.shape, x.dtype),
        compiler_params=pltpu.CompilerParams(
            dimension_semantics=("parallel",),
            vmem_limit_bytes=VMEM_LIMIT),
    )(x, gamma.reshape(1, E), beta.reshape(1, E))


# ------------------------- fused tiled matmul kernel ------------------------

def _gelu_new(x):
    # "gelu_new" (tanh approximation) as used by GPT-J; runs in f32 on EUP/VPU.
    return 0.5 * x * (1.0 + jnp.tanh(
        math.sqrt(2.0 / math.pi) * (x + 0.044715 * x * x * x)))


def _mm_kernel(*refs, has_bias, act, n_res):
    # refs: x, w, [bias], res..., out, acc_scratch
    idx = 0
    x_ref = refs[idx]; idx += 1
    w_ref = refs[idx]; idx += 1
    b_ref = None
    if has_bias:
        b_ref = refs[idx]; idx += 1
    res_refs = refs[idx:idx + n_res]; idx += n_res
    o_ref = refs[idx]; idx += 1
    acc_ref = refs[idx]

    k = pl.program_id(2)

    @pl.when(k == 0)
    def _():
        acc_ref[...] = jnp.zeros_like(acc_ref)

    acc_ref[...] += jnp.dot(x_ref[...], w_ref[...],
                            preferred_element_type=jnp.float32)

    @pl.when(k == pl.num_programs(2) - 1)
    def _():
        out = acc_ref[...]
        if has_bias:
            out = out + b_ref[...].astype(jnp.float32)
        if act == "gelu_new":
            out = _gelu_new(out)
        for r in res_refs:
            out = out + r[...].astype(jnp.float32)
        o_ref[...] = out.astype(o_ref.dtype)


def fused_matmul(x, w, bias=None, residuals=(), activation=None,
                 *, tm=256, tn=512, tk=1024):
    """y = act(x @ w + bias) + sum(residuals).  w: [in, out]; bf16 in, f32 acc."""
    M, K = x.shape
    K2, N = w.shape
    assert K == K2
    tm = _pick_tile(M, tm)
    tn = _pick_tile(N, tn)
    tk = _pick_tile(K, tk)
    grid = (M // tm, N // tn, K // tk)

    in_specs = [pl.BlockSpec((tm, tk), lambda i, j, k: (i, k)),
                pl.BlockSpec((tk, tn), lambda i, j, k: (k, j))]
    inputs = [x, w]
    if bias is not None:
        in_specs.append(pl.BlockSpec((1, tn), lambda i, j, k: (0, j)))
        inputs.append(bias.reshape(1, N))
    for r in residuals:
        in_specs.append(pl.BlockSpec((tm, tn), lambda i, j, k: (i, j)))
        inputs.append(r)

    kernel = functools.partial(_mm_kernel, has_bias=bias is not None,
                               act=activation, n_res=len(residuals))
    return pl.pallas_call(
        kernel,
        grid=grid,
        in_specs=in_specs,
        out_specs=pl.BlockSpec((tm, tn), lambda i, j, k: (i, j)),
        out_shape=jax.ShapeDtypeStruct((M, N), x.dtype),
        scratch_shapes=[pltpu.VMEM((tm, tn), jnp.float32)],
        compiler_params=pltpu.CompilerParams(
            dimension_semantics=("parallel", "parallel", "arbitrary"),
            vmem_limit_bytes=VMEM_LIMIT),
    )(*inputs)


# ------------------------- flash causal attention ---------------------------

def _flash_attn_kernel(q_ref, k_ref, v_ref, o_ref, m_sc, l_sc, acc_sc,
                       *, scale, tq, tkv):
    qi = pl.program_id(1)
    ki = pl.program_id(2)

    @pl.when(ki == 0)
    def _():
        m_sc[...] = jnp.full_like(m_sc, -jnp.inf)
        l_sc[...] = jnp.zeros_like(l_sc)
        acc_sc[...] = jnp.zeros_like(acc_sc)

    # Skip blocks that lie entirely above the causal diagonal.
    @pl.when(ki * tkv <= qi * tq + (tq - 1))
    def _():
        q = q_ref[0]                      # [tq, D]  bf16, fed straight to MXU
        k = k_ref[0]                      # [tkv, D]
        # Contract last dims -> no explicit K transpose (keeps XLU free).
        s = lax.dot_general(q, k, (((1,), (1,)), ((), ())),
                            preferred_element_type=jnp.float32) * scale
        row = qi * tq + lax.broadcasted_iota(jnp.int32, (tq, tkv), 0)
        col = ki * tkv + lax.broadcasted_iota(jnp.int32, (tq, tkv), 1)
        s = jnp.where(col <= row, s, -jnp.inf)

        m_prev = m_sc[...]
        m_new = jnp.maximum(m_prev, jnp.max(s, axis=-1, keepdims=True))
        alpha = jnp.exp(m_prev - m_new)
        p = jnp.exp(s - m_new)
        l_sc[...] = alpha * l_sc[...] + jnp.sum(p, axis=-1, keepdims=True)
        acc_sc[...] = alpha * acc_sc[...] + lax.dot_general(
            p.astype(v_ref.dtype), v_ref[0], (((1,), (0,)), ((), ())),
            preferred_element_type=jnp.float32)
        m_sc[...] = m_new

    @pl.when(ki == pl.num_programs(2) - 1)
    def _():
        # Diagonal is always unmasked -> l > 0, approx reciprocal is safe.
        o_ref[0] = (acc_sc[...] *
                    pl.reciprocal(l_sc[...], approx=True)).astype(o_ref.dtype)


def causal_flash_attention(q, k, v, scale, *, seq_tile=256):
    """q, k, v: [H, S, D] -> [H, S, D], causal flash attention per head."""
    H, S, D = q.shape
    t = _pick_tile(S, seq_tile)
    grid = (H, S // t, S // t)
    q_spec = pl.BlockSpec((1, t, D), lambda h, qi, ki: (h, qi, 0))
    kv_spec = pl.BlockSpec((1, t, D), lambda h, qi, ki: (h, ki, 0))
    out_spec = pl.BlockSpec((1, t, D), lambda h, qi, ki: (h, qi, 0))
    return pl.pallas_call(
        functools.partial(_flash_attn_kernel, scale=scale, tq=t, tkv=t),
        grid=grid,
        in_specs=[q_spec, kv_spec, kv_spec],
        out_specs=out_spec,
        out_shape=jax.ShapeDtypeStruct((H, S, D), q.dtype),
        scratch_shapes=[pltpu.VMEM((t, 1), jnp.float32),
                        pltpu.VMEM((t, 1), jnp.float32),
                        pltpu.VMEM((t, D), jnp.float32)],
        compiler_params=pltpu.CompilerParams(
            dimension_semantics=("parallel", "parallel", "arbitrary"),
            vmem_limit_bytes=VMEM_LIMIT),
    )(q, k, v)


# ------------------------------- glue (JAX) ---------------------------------

def apply_gptj_rope(x, positions, rotary_dim):
    """GPT-J interleaved rotary embedding on the first `rotary_dim` dims.

    x: [H, S, D], positions: [S]
    """
    inv_freq = 1.0 / (10000.0 ** (
        jnp.arange(0, rotary_dim, 2, dtype=jnp.float32) / rotary_dim))
    sinusoid = positions.astype(jnp.float32)[:, None] * inv_freq[None, :]
    sin = jnp.sin(sinusoid)[None, :, :]   # [1, S, rotary_dim//2]
    cos = jnp.cos(sinusoid)[None, :, :]

    x_rot = x[..., :rotary_dim]
    x_pass = x[..., rotary_dim:]
    x1 = x_rot[..., 0::2]
    x2 = x_rot[..., 1::2]
    r1 = x1 * cos - x2 * sin
    r2 = x1 * sin + x2 * cos
    rot = jnp.stack([r1, r2], axis=-1).reshape(x_rot.shape)
    return jnp.concatenate([rot, x_pass.astype(jnp.float32)],
                           axis=-1).astype(x.dtype)


def gptj_block(x, layer, positions, *, num_heads, head_size, rotary_dim, eps):
    S, E = x.shape
    residual = x
    ln1 = layernorm(x, layer["ln1_g"], layer["ln1_b"], eps)

    # --- attention ---
    qkv = fused_matmul(ln1, layer["qkv_w"])                    # [S, 3E]
    q, k, v = jnp.split(qkv, 3, axis=-1)
    q = q.reshape(S, num_heads, head_size).transpose(1, 0, 2)  # [H, S, D]
    k = k.reshape(S, num_heads, head_size).transpose(1, 0, 2)
    v = v.reshape(S, num_heads, head_size).transpose(1, 0, 2)
    q = apply_gptj_rope(q, positions, rotary_dim)
    k = apply_gptj_rope(k, positions, rotary_dim)
    scale = head_size ** (-0.5)
    attn = causal_flash_attention(q, k, v, scale)              # [H, S, D]
    attn = attn.transpose(1, 0, 2).reshape(S, E)
    attn_out = fused_matmul(attn, layer["out_w"])              # [S, E]

    # --- MLP (GPT-J parallel structure, runs on ln1 output) ---
    h = fused_matmul(ln1, layer["fc_in_w"], bias=layer["fc_in_b"],
                     activation="gelu_new")
    # fc_out epilogue fuses bias + attn_out + residual adds (no extra HBM hops).
    out = fused_matmul(h, layer["fc_out_w"], bias=layer["fc_out_b"],
                       residuals=(attn_out, residual))
    return out


def gptj_model(params, input_ids, position_ids, cfg):
    x = jnp.take(params["wte"], input_ids, axis=0)             # [S, E] bf16
    for layer in params["layers"]:
        x = gptj_block(
            x, layer, position_ids,
            num_heads=cfg["num_heads"],
            head_size=cfg["head_size"],
            rotary_dim=cfg["rotary_dim"],
            eps=cfg["eps"],
        )
    return layernorm(x, params["ln_f_g"], params["ln_f_b"], cfg["eps"])


# ----------------------------- param init -----------------------------------

def init_params(key, cfg):
    E = cfg["n_embd"]
    I = cfg["n_inner"]
    V = cfg["vocab_size"]
    L = cfg["n_layer"]
    wdt = jnp.bfloat16   # weights & activations in bf16; f32 accumulation

    def normal(k, shape, scale=0.02):
        return (scale * jax.random.normal(k, shape, dtype=jnp.float32)).astype(wdt)

    keys = jax.random.split(key, 1 + L)
    params = {
        "wte": normal(keys[0], (V, E)),
        "ln_f_g": jnp.ones((E,), jnp.float32),
        "ln_f_b": jnp.zeros((E,), jnp.float32),
        "layers": [],
    }
    for li in range(L):
        ks = jax.random.split(keys[1 + li], 4)
        params["layers"].append({
            "ln1_g": jnp.ones((E,), jnp.float32),
            "ln1_b": jnp.zeros((E,), jnp.float32),
            "qkv_w": normal(ks[0], (E, 3 * E)),      # [in, out], no bias
            "out_w": normal(ks[1], (E, E)),          # [in, out], no bias
            "fc_in_w": normal(ks[2], (E, I)),
            "fc_in_b": jnp.zeros((I,), jnp.float32),
            "fc_out_w": normal(ks[3], (I, E)),
            "fc_out_b": jnp.zeros((E,), jnp.float32),
        })
    return params


# --------------------------------- main --------------------------------------

if __name__ == "__main__":
    cfg = {
        "vocab_size": 128,
        "n_embd": 64,
        "num_heads": 4,
        "head_size": 16,
        "rotary_dim": 8,      # even, < head_size (partial rotary, GPT-J style)
        "n_inner": 4 * 64,
        "n_layer": 2,
        "eps": 1e-5,
    }
    seq_len = 8

    key = jax.random.PRNGKey(0)
    k_params, k_ids = jax.random.split(key)
    params = init_params(k_params, cfg)

    input_ids = jax.random.randint(k_ids, (seq_len,), 0, cfg["vocab_size"],
                                   dtype=jnp.int32)
    position_ids = jnp.arange(seq_len, dtype=jnp.int32)

    out = gptj_model(params, input_ids, position_ids, cfg)
    out = jax.block_until_ready(out)
    assert out.shape == (seq_len, cfg["n_embd"])
    assert bool(jnp.all(jnp.isfinite(out.astype(jnp.float32))))
    print("KERNEL_OK")
</pallas_src>

<mosaic_0001>
module attributes {stable_mosaic.version = 11 : i64} {
  func.func @_layernorm_kernel(%arg0: i32, %arg1: memref<8x64xbf16, #tpu.memory_space<vmem>>, %arg2: memref<1x64xf32, #tpu.memory_space<vmem>>, %arg3: memref<1x64xf32, #tpu.memory_space<vmem>>, %arg4: memref<8x64xbf16, #tpu.memory_space<vmem>>) attributes {dimension_semantics = [#tpu.dimension_semantics<parallel>], iteration_bounds = array<i64: 1>, scalar_prefetch = 0 : i64, scratch_operands = 0 : i64, tpu.core_type = #tpu.core_type<tc>, window_params = [{transform_indices = @transform_0, window_bounds = array<i64: 8, 64>}, {pipeline_mode = #tpu.pipeline_mode<synchronous>, transform_indices = @transform_1, window_bounds = array<i64: 1, 64>}, {pipeline_mode = #tpu.pipeline_mode<synchronous>, transform_indices = @transform_2, window_bounds = array<i64: 1, 64>}, {transform_indices = @transform_3, window_bounds = array<i64: 8, 64>}]} {
    %c0 = arith.constant 0 : index
    %c0_0 = arith.constant 0 : index
    %0 = vector.load %arg1[%c0, %c0_0] : memref<8x64xbf16, #tpu.memory_space<vmem>>, vector<8x64xbf16>
    %1 = arith.extf %0 : vector<8x64xbf16> to vector<8x64xf32>
    %cst = arith.constant dense<0.000000e+00> : vector<8xf32>
    %2 = vector.multi_reduction <add>, %1, %cst [1] : vector<8x64xf32> to vector<8xf32>
    %3 = vector.shape_cast %2 : vector<8xf32> to vector<8x1xf32>
    %cst_1 = arith.constant 6.400000e+01 : f32
    %4 = vector.broadcast %cst_1 : f32 to vector<8x1xf32>
    %5 = arith.divf %3, %4 : vector<8x1xf32>
    %6 = vector.broadcast %5 : vector<8x1xf32> to vector<8x64xf32>
    %7 = arith.subf %1, %6 : vector<8x64xf32>
    %8 = arith.mulf %7, %7 : vector<8x64xf32>
    %cst_2 = arith.constant dense<0.000000e+00> : vector<8xf32>
    %9 = vector.multi_reduction <add>, %8, %cst_2 [1] : vector<8x64xf32> to vector<8xf32>
    %10 = vector.shape_cast %9 : vector<8xf32> to vector<8x1xf32>
    %cst_3 = arith.constant 6.400000e+01 : f32
    %11 = vector.broadcast %cst_3 : f32 to vector<8x1xf32>
    %12 = arith.divf %10, %11 : vector<8x1xf32>
    %13 = vector.broadcast %5 : vector<8x1xf32> to vector<8x64xf32>
    %14 = arith.subf %1, %13 : vector<8x64xf32>
    %cst_4 = arith.constant 9.99999974E-6 : f32
    %15 = vector.broadcast %cst_4 : f32 to vector<8x1xf32>
    %16 = arith.addf %12, %15 : vector<8x1xf32>
    %17 = math.rsqrt %16 : vector<8x1xf32>
    %18 = vector.broadcast %17 : vector<8x1xf32> to vector<8x64xf32>
    %19 = arith.mulf %14, %18 : vector<8x64xf32>
    %c0_5 = arith.constant 0 : index
    %c0_6 = arith.constant 0 : index
    %20 = vector.load %arg2[%c0_5, %c0_6] : memref<1x64xf32, #tpu.memory_space<vmem>>, vector<1x64xf32>
    %21 = vector.broadcast %20 : vector<1x64xf32> to vector<8x64xf32>
    %22 = arith.mulf %19, %21 : vector<8x64xf32>
    %c0_7 = arith.constant 0 : index
    %c0_8 = arith.constant 0 : index
    %23 = vector.load %arg3[%c0_7, %c0_8] : memref<1x64xf32, #tpu.memory_space<vmem>>, vector<1x64xf32>
    %24 = vector.broadcast %23 : vector<1x64xf32> to vector<8x64xf32>
    %25 = arith.addf %22, %24 : vector<8x64xf32>
    %26 = arith.truncf %25 : vector<8x64xf32> to vector<8x64xbf16>
    %c0_9 = arith.constant 0 : index
    %c0_10 = arith.constant 0 : index
    %27 = vector.load %arg4[%c0_9, %c0_10] : memref<8x64xbf16, #tpu.memory_space<vmem>>, vector<8x64xbf16>
    tpu.vector_store %arg4[%c0_9, %c0_10], %26 {strides = array<i32>} : memref<8x64xbf16, #tpu.memory_space<vmem>>, vector<8x64xbf16>,
    return
  }
  func.func @transform_0(%arg0: i32) -> (i32, i32) {
    %c0_i32 = arith.constant 0 : i32
    %c0_i32_0 = arith.constant 0 : i32
    return %arg0, %c0_i32 : i32, i32
  }
  func.func @transform_1(%arg0: i32) -> (i32, i32) {
    %c0_i32 = arith.constant 0 : i32
    %c0_i32_0 = arith.constant 0 : i32
    %c0_i32_1 = arith.constant 0 : i32
    return %c0_i32, %c0_i32_0 : i32, i32
  }
  func.func @transform_2(%arg0: i32) -> (i32, i32) {
    %c0_i32 = arith.constant 0 : i32
    %c0_i32_0 = arith.constant 0 : i32
    %c0_i32_1 = arith.constant 0 : i32
    return %c0_i32, %c0_i32_0 : i32, i32
  }
  func.func @transform_3(%arg0: i32) -> (i32, i32) {
    %c0_i32 = arith.constant 0 : i32
    %c0_i32_0 = arith.constant 0 : i32
    return %arg0, %c0_i32 : i32, i32
  }
}

</mosaic_0001>

<llo_original>
// kernel: tpu_custom_call.1
$region0: #{tpu_custom_call.1}
  #allocation0 [shape = 'u32[]', space=smem, size = 0x4, offset = 0x4, fixed_abs, tag = 'smem constant byte address 0x4 - core index']
  #allocation1 [shape = 'u32[144,128]{1,0:T(1,128)}', space=vmem, size = 0x12000, scoped, tag = 'internal scratch']
  %s0 = inlined_call_operand.hbm [shape: bf16[8,64], index: 0, kind: input, shape index: {}]
  %s1 = inlined_call_operand.vmem [shape: f32[1,64], index: 1, kind: input, shape index: {}]
  %s2 = inlined_call_operand.vmem [shape: f32[1,64], index: 2, kind: input, shape index: {}]
  %s3 = inlined_call_operand.hbm [shape: bf16[8,64], index: 3, kind: output, shape index: {}]
  %s4 = sld [smem:[#allocation0]]
  $region26: #{tpu_custom_call.1} parent=0
    _
  %s6 = ssub.s32 1, %s4
  %s7 = scalar_select 0, %s6, %s4
  $region1: #{tpu_custom_call.1} parent=0
    #allocation2 [shape = 'u8[2048]{0}', space=vmem, size = 0x800, scoped, tag = 'input window, operand 0, single buffered']
    #allocation3 [shape = 's32[1]{0}', space=sflag, size = 0x4, scoped, tag = 'scoped memory for tpu_custom_call.1']
    #allocation4 [shape = 's32[1]{0}', space=sflag, size = 0x4, scoped, tag = 'scoped memory for tpu_custom_call.1']
    #allocation5 [shape = 'u8[2048]{0}', space=vmem, size = 0x800, scoped, tag = 'output window, operand 0, single buffered']
    %8 = vsyncpa [#allocation3], 0
    %9 = vsyncpa [#allocation4], 0
    // Predicated region
    $region2: #{tpu_custom_call.1} parent=1 // pred_check
      _
    $region3: #{tpu_custom_call.1} parent=1 // pred_check_branch
      %11 = sbr.rel (0) target = $region5
    $region4: #{tpu_custom_call.1} parent=1 // pred_region
      %s13 = ssub.s32 64, 64
      %14 = vsyncadd [#allocation3], %s13
      %s16 = sshll.u32 [#allocation2], 4
      %s17 = int_to_ptr.vmem [resolvable:$true] %s16
      %19 = dma.hbm_to_vmem [thread:$0]  %s0, 64, %s17, [#allocation3]
    $region5: #{tpu_custom_call.1} parent=1 // pred_fallthru
      _
    // Predicated region
    $region6: #{tpu_custom_call.1} parent=1 // pred_check
      _
    $region7: #{tpu_custom_call.1} parent=1 // pred_check_branch
      %21 = sbr.rel (0) target = $region9
    $region8: #{tpu_custom_call.1} parent=1 // pred_region
      _
    $region9: #{tpu_custom_call.1} parent=1 // pred_fallthru
      _
    // Predicated region
    $region10: #{tpu_custom_call.1} parent=1 // pred_check
      _
    $region11: #{tpu_custom_call.1} parent=1 // pred_check_branch
      %23 = sbr.rel (0) target = $region13
    $region12: #{tpu_custom_call.1} parent=1 // pred_region
      _
    $region13: #{tpu_custom_call.1} parent=1 // pred_fallthru
      _
    // Predicated region
    $region14: #{tpu_custom_call.1} parent=1 // pred_check
      _
    $region15: #{tpu_custom_call.1} parent=1 // pred_check_branch
      %25 = sbr.rel (0) target = $region17
    $region16: #{tpu_custom_call.1} parent=1 // pred_region
      %26 = dma.done [#allocation3], 64
    $region17: #{tpu_custom_call.1} parent=1 // pred_fallthru
      _
    %v27 = vld [vmem:[#allocation2] sm:$0xf]
    %v28 = vunpack.c.l.bf16 %v27
    %vm29 = vcmask 523264
    %v30 = vsel %vm29, %v28, 0.0
    %31 = vadd.xlane.f32.xlu0 %v30
    %v32 = vpop.xlane.xlu0 %31
    %v33 = vrcp.pop 64.0
    %v34 = vmul.f32 %v32, %v33
    %v35 = vsub.f32 %v28, %v34
    %v36 = vmul.f32 %v35, %v35
    %v37 = vsel %vm29, %v36, 0.0
    %38 = vadd.xlane.f32.xlu0 %v37
    %v39 = vpop.xlane.xlu0 %38
    %v40 = vmul.f32 %v39, %v33
    %v41 = vadd.f32 %v40, 1e-05
    %v42 = vrsqrt.pop %v41
    %v43 = vmul.f32 %v35, %v42
    %v44 = vld [vmem:[%s1] sm:$0x1]
    %v46 = vlaneseq
    %v47 = vshrl.u32 %v46, 7
    %v48 = vsub.s32 0, %v47
    %v49 = vrot.slane %v44, %v48
    %v51 = vmul.f32 %v43, %v49
    %v52 = vld [vmem:[%s2] sm:$0x1]
    %v54 = vlaneseq
    %v55 = vshrl.u32 %v54, 7
    %v56 = vsub.s32 0, %v55
    %v57 = vrot.slane %v52, %v56
    %v59 = vadd.f32 %v51, %v57
    %v60 = vpack.c.bf16 %v59, %v59
    %vm61 = vcmask 519168
    %62 = vst.msk [vmem:[#allocation5] sm:$0xf] %vm61, %v60
    // Predicated region
    $region18: #{tpu_custom_call.1} parent=1 // pred_check
      _
    $region19: #{tpu_custom_call.1} parent=1 // pred_check_branch
      %64 = sbr.rel (0) target = $region21
    $region20: #{tpu_custom_call.1} parent=1 // pred_region
      %s66 = ssub.s32 64, 64
      %67 = vsyncadd [#allocation4], %s66
      %s69 = sshll.u32 [#allocation5], 4
      %s70 = int_to_ptr.vmem [resolvable:$true] %s69
      %72 = dma.vmem_to_hbm [thread:$0]  %s70, 64, %s3, [#allocation4]
    $region21: #{tpu_custom_call.1} parent=1 // pred_fallthru
      _
    // Predicated region
    $region22: #{tpu_custom_call.1} parent=1 // pred_check
      _
    $region23: #{tpu_custom_call.1} parent=1 // pred_check_branch
      %74 = sbr.rel (0) target = $region25
    $region24: #{tpu_custom_call.1} parent=1 // pred_region
      %75 = dma.done [#allocation4], 64
    $region25: #{tpu_custom_call.1} parent=1 // pred_fallthru
      _
    %76 = vsyncpa [#allocation3], 1
    %77 = vsyncpa [#allocation4], 1

</llo_original>
